<compile_context>
chip_gen: v7x
topology: tpu7x:2x2x1
jax: 0.10.0
libtpu: 0.0.40
codegen_flags: <defaults>
</compile_context>

<pallas_src>
import math

import jax
import jax.numpy as jnp
from jax import lax
from jax.experimental import pallas as pl
from jax.experimental.pallas import tpu as pltpu

_INV_SQRT2 = 1.0 / math.sqrt(2.0)
_LN_EPS = 1e-12


def _head_kernel(x_ref, w1_ref, b1_ref, g_ref, be_ref, w2_ref, b2_ref,
                 out_ref, hn_ref):
    # grid = (nb, nc); batch tile i outer ("parallel"), C tile j inner.
    j = pl.program_id(1)

    # Linear1 + GeLU + LayerNorm once per batch tile, kept in VMEM scratch.
    @pl.when(j == 0)
    def _():
        x = x_ref[...].astype(jnp.bfloat16)                 # MXU in bf16
        h = jnp.dot(x, w1_ref[...], preferred_element_type=jnp.float32)
        h = h + b1_ref[...]                                 # f32 epilogue
        # Exact (erf-based) GeLU, matching the PyTorch module.
        h = 0.5 * h * (1.0 + lax.erf(h * _INV_SQRT2))
        # LayerNorm(eps=1e-12), single-pass moments: var = E[h^2] - mu^2.
        mu = jnp.mean(h, axis=-1, keepdims=True)
        ms = jnp.mean(h * h, axis=-1, keepdims=True)
        var = jnp.maximum(ms - mu * mu, 0.0)
        hn = (h - mu) * lax.rsqrt(var + _LN_EPS)
        hn_ref[...] = hn * g_ref[...] + be_ref[...]

    # Linear2 on the resident LN output, one lane-dense C tile per grid step.
    logit = jnp.dot(hn_ref[...].astype(jnp.bfloat16), w2_ref[...],
                    preferred_element_type=jnp.float32) + b2_ref[...]
    out_ref[...] = logit.astype(out_ref.dtype)


def _round_up(x, m):
    return (x + m - 1) // m * m


def logit_fc_pallas(x, w1, b1, gamma, beta, w2, b2):
    """logit_fc head: Linear(H->2H) -> GeLU -> LayerNorm -> Linear(2H->C)."""
    B, H = x.shape
    H2 = w1.shape[1]
    C = w2.shape[1]

    # Batch tile: multiple of 8 sublanes (f32), up to 128 rows per MXU pass.
    TB = 128 if B >= 128 else _round_up(B, 8)
    Bp = _round_up(B, TB)
    # Lane-dense output: pad C to a multiple of 128; stream W2 in C tiles of
    # <= 256 so W2 double-buffering stays well inside VMEM (v7x: 64 MiB).
    TC = 256 if C > 256 else _round_up(C, 128)
    Cp = _round_up(C, TC)

    xp = x if Bp == B else jnp.pad(x, ((0, Bp - B), (0, 0)))
    w2p = w2 if Cp == C else jnp.pad(w2, ((0, 0), (0, Cp - C)))
    b2p = b2 if Cp == C else jnp.pad(b2, ((0, 0), (0, Cp - C)))

    # Weights in bf16 (halves HBM traffic); biases / LN params stay f32.
    w1b = w1.astype(jnp.bfloat16)
    w2b = w2p.astype(jnp.bfloat16)

    nb, nc = Bp // TB, Cp // TC

    out = pl.pallas_call(
        _head_kernel,
        out_shape=jax.ShapeDtypeStruct((Bp, Cp), jnp.float32),
        grid_spec=pltpu.PrefetchScalarGridSpec(
            num_scalar_prefetch=0,
            grid=(nb, nc),
            in_specs=[
                pl.BlockSpec((TB, H), lambda i, j: (i, 0)),   # x batch tile
                pl.BlockSpec((H, H2), lambda i, j: (0, 0)),   # W1 (resident)
                pl.BlockSpec((1, H2), lambda i, j: (0, 0)),   # b1 (resident)
                pl.BlockSpec((1, H2), lambda i, j: (0, 0)),   # LN gamma
                pl.BlockSpec((1, H2), lambda i, j: (0, 0)),   # LN beta
                pl.BlockSpec((H2, TC), lambda i, j: (0, j)),  # W2 C tile
                pl.BlockSpec((1, TC), lambda i, j: (0, j)),   # b2 C tile
            ],
            out_specs=pl.BlockSpec((TB, TC), lambda i, j: (i, j)),
            scratch_shapes=[pltpu.VMEM((TB, H2), jnp.float32)],
        ),
        compiler_params=pltpu.CompilerParams(
            dimension_semantics=("parallel", "arbitrary")),
    )(xp, w1b, b1, gamma, beta, w2b, b2p)

    return out[:B, :C]


def _xavier_uniform(key, fan_in, fan_out):
    bound = math.sqrt(6.0 / (fan_in + fan_out))
    return jax.random.uniform(key, (fan_in, fan_out), jnp.float32, -bound, bound)


def _reference(x, w1, b1, gamma, beta, w2, b2, *, mixed):
    """Pure-JAX reference of the PyTorch head.  `mixed=True` mirrors the
    kernel's bf16 matmul inputs with f32 accumulation."""
    cast = (lambda a: a.astype(jnp.bfloat16)) if mixed else (lambda a: a)
    h = jnp.dot(cast(x), cast(w1), preferred_element_type=jnp.float32) + b1
    h = 0.5 * h * (1.0 + lax.erf(h / math.sqrt(2.0)))
    mu = jnp.mean(h, axis=-1, keepdims=True)
    var = jnp.mean((h - mu) ** 2, axis=-1, keepdims=True)
    hn = (h - mu) / jnp.sqrt(var + _LN_EPS) * gamma + beta
    return jnp.dot(cast(hn), cast(w2), preferred_element_type=jnp.float32) + b2


if __name__ == "__main__":
    B, H, NUM_CLASS = 8, 32, 8          # small synthetic sizes; hid_dim*2 = 64
    H2 = 2 * H

    key = jax.random.PRNGKey(0)
    k_x, k_w1, k_w2 = jax.random.split(key, 3)

    # pooled_output stand-in (UniterModel backbone output).
    x = jax.random.normal(k_x, (B, H), jnp.float32)

    # init_weights_a: xavier_uniform on Linear weights, zero biases,
    #                 LayerNorm weight=1, bias=0.
    w1 = _xavier_uniform(k_w1, H, H2)
    b1 = jnp.zeros((1, H2), jnp.float32)
    gamma = jnp.ones((1, H2), jnp.float32)
    beta = jnp.zeros((1, H2), jnp.float32)
    w2 = _xavier_uniform(k_w2, H2, NUM_CLASS)
    b2 = jnp.zeros((1, NUM_CLASS), jnp.float32)

    out = jax.block_until_ready(logit_fc_pallas(x, w1, b1, gamma, beta, w2, b2))
    assert out.shape == (B, NUM_CLASS)

    # Strict check against a reference that mirrors the kernel's bf16 matmuls.
    ref_mixed = _reference(x, w1, b1, gamma, beta, w2, b2, mixed=True)
    assert jnp.allclose(out, ref_mixed, atol=1e-3, rtol=1e-3), \
        "mismatch vs mixed-precision reference"

    # Loose sanity check against the full-f32 PyTorch-equivalent reference
    # (bf16 matmul inputs are an intentional accuracy/bandwidth tradeoff).
    ref_f32 = _reference(x, w1, b1, gamma, beta, w2, b2, mixed=False)
    assert jnp.allclose(out, ref_f32, atol=1e-1, rtol=1e-1), \
        "mismatch vs f32 reference"

    print("KERNEL_OK")
</pallas_src>

<mosaic_0001>
module attributes {stable_mosaic.version = 11 : i64} {
  func.func @_head_kernel(%arg0: i32, %arg1: i32, %arg2: memref<8x32xf32, #tpu.memory_space<vmem>>, %arg3: memref<32x64xbf16, #tpu.memory_space<vmem>>, %arg4: memref<1x64xf32, #tpu.memory_space<vmem>>, %arg5: memref<1x64xf32, #tpu.memory_space<vmem>>, %arg6: memref<1x64xf32, #tpu.memory_space<vmem>>, %arg7: memref<64x128xbf16, #tpu.memory_space<vmem>>, %arg8: memref<1x128xf32, #tpu.memory_space<vmem>>, %arg9: memref<8x128xf32, #tpu.memory_space<vmem>>, %arg10: memref<8x64xf32, #tpu.memory_space<vmem>>) attributes {dimension_semantics = [#tpu.dimension_semantics<parallel>, #tpu.dimension_semantics<arbitrary>], iteration_bounds = array<i64: 1, 1>, scalar_prefetch = 0 : i64, scratch_operands = 1 : i64, tpu.core_type = #tpu.core_type<tc>, window_params = [{transform_indices = @transform_0, window_bounds = array<i64: 8, 32>}, {pipeline_mode = #tpu.pipeline_mode<synchronous>, transform_indices = @transform_1, window_bounds = array<i64: 32, 64>}, {pipeline_mode = #tpu.pipeline_mode<synchronous>, transform_indices = @transform_2, window_bounds = array<i64: 1, 64>}, {pipeline_mode = #tpu.pipeline_mode<synchronous>, transform_indices = @transform_3, window_bounds = array<i64: 1, 64>}, {pipeline_mode = #tpu.pipeline_mode<synchronous>, transform_indices = @transform_4, window_bounds = array<i64: 1, 64>}, {transform_indices = @transform_5, window_bounds = array<i64: 64, 128>}, {transform_indices = @transform_6, window_bounds = array<i64: 1, 128>}, {transform_indices = @transform_7, window_bounds = array<i64: 8, 128>}]} {
    %c0_i32 = arith.constant 0 : i32
    %0 = arith.cmpi eq, %arg1, %c0_i32 : i32
    %1 = arith.extui %0 : i1 to i32
    %c0_i32_0 = arith.constant 0 : i32
    %2 = arith.cmpi ne, %1, %c0_i32_0 : i32
    scf.if %2 {
      %c0_8 = arith.constant 0 : index
      %c0_9 = arith.constant 0 : index
      %11 = vector.load %arg2[%c0_8, %c0_9] : memref<8x32xf32, #tpu.memory_space<vmem>>, vector<8x32xf32>
      %12 = arith.truncf %11 : vector<8x32xf32> to vector<8x32xbf16>
      %c0_10 = arith.constant 0 : index
      %c0_11 = arith.constant 0 : index
      %13 = vector.load %arg3[%c0_10, %c0_11] : memref<32x64xbf16, #tpu.memory_space<vmem>>, vector<32x64xbf16>
      %cst_12 = arith.constant dense<0.000000e+00> : vector<8x64xf32>
      %14 = tpu.matmul %12, %13, %cst_12 {dimension_numbers = #tpu.dot_dimension_numbers<[1], [0], [0], [1], [0, 0, 1, 1], [], []>} : vector<8x32xbf16>, vector<32x64xbf16>, vector<8x64xf32> -> vector<8x64xf32>
      %c0_13 = arith.constant 0 : index
      %c0_14 = arith.constant 0 : index
      %15 = vector.load %arg4[%c0_13, %c0_14] : memref<1x64xf32, #tpu.memory_space<vmem>>, vector<1x64xf32>
      %16 = vector.broadcast %15 : vector<1x64xf32> to vector<8x64xf32>
      %17 = arith.addf %14, %16 : vector<8x64xf32>
      %cst_15 = arith.constant 5.000000e-01 : f32
      %18 = vector.broadcast %cst_15 : f32 to vector<8x64xf32>
      %19 = arith.mulf %18, %17 : vector<8x64xf32>
      %cst_16 = arith.constant 0.707106769 : f32
      %20 = vector.broadcast %cst_16 : f32 to vector<8x64xf32>
      %21 = arith.mulf %17, %20 : vector<8x64xf32>
      %22 = math.erf %21 : vector<8x64xf32>
      %cst_17 = arith.constant 1.000000e+00 : f32
      %23 = vector.broadcast %cst_17 : f32 to vector<8x64xf32>
      %24 = arith.addf %23, %22 : vector<8x64xf32>
      %25 = arith.mulf %19, %24 : vector<8x64xf32>
      %cst_18 = arith.constant dense<0.000000e+00> : vector<8xf32>
      %26 = vector.multi_reduction <add>, %25, %cst_18 [1] : vector<8x64xf32> to vector<8xf32>
      %27 = vector.shape_cast %26 : vector<8xf32> to vector<8x1xf32>
      %cst_19 = arith.constant 6.400000e+01 : f32
      %28 = vector.broadcast %cst_19 : f32 to vector<8x1xf32>
      %29 = arith.divf %27, %28 : vector<8x1xf32>
      %30 = arith.mulf %25, %25 : vector<8x64xf32>
      %cst_20 = arith.constant dense<0.000000e+00> : vector<8xf32>
      %31 = vector.multi_reduction <add>, %30, %cst_20 [1] : vector<8x64xf32> to vector<8xf32>
      %32 = vector.shape_cast %31 : vector<8xf32> to vector<8x1xf32>
      %cst_21 = arith.constant 6.400000e+01 : f32
      %33 = vector.broadcast %cst_21 : f32 to vector<8x1xf32>
      %34 = arith.divf %32, %33 : vector<8x1xf32>
      %35 = arith.mulf %29, %29 : vector<8x1xf32>
      %36 = arith.subf %34, %35 : vector<8x1xf32>
      %cst_22 = arith.constant 0.000000e+00 : f32
      %37 = vector.broadcast %cst_22 : f32 to vector<8x1xf32>
      %38 = arith.maximumf %36, %37 : vector<8x1xf32>
      %39 = vector.broadcast %29 : vector<8x1xf32> to vector<8x64xf32>
      %40 = arith.subf %25, %39 : vector<8x64xf32>
      %cst_23 = arith.constant 9.99999996E-13 : f32
      %41 = vector.broadcast %cst_23 : f32 to vector<8x1xf32>
      %42 = arith.addf %38, %41 : vector<8x1xf32>
      %43 = math.rsqrt %42 : vector<8x1xf32>
      %44 = vector.broadcast %43 : vector<8x1xf32> to vector<8x64xf32>
      %45 = arith.mulf %40, %44 : vector<8x64xf32>
      %c0_24 = arith.constant 0 : index
      %c0_25 = arith.constant 0 : index
      %46 = vector.load %arg5[%c0_24, %c0_25] : memref<1x64xf32, #tpu.memory_space<vmem>>, vector<1x64xf32>
      %47 = vector.broadcast %46 : vector<1x64xf32> to vector<8x64xf32>
      %48 = arith.mulf %45, %47 : vector<8x64xf32>
      %c0_26 = arith.constant 0 : index
      %c0_27 = arith.constant 0 : index
      %49 = vector.load %arg6[%c0_26, %c0_27] : memref<1x64xf32, #tpu.memory_space<vmem>>, vector<1x64xf32>
      %50 = vector.broadcast %49 : vector<1x64xf32> to vector<8x64xf32>
      %51 = arith.addf %48, %50 : vector<8x64xf32>
      %c0_28 = arith.constant 0 : index
      %c0_29 = arith.constant 0 : index
      %52 = vector.load %arg10[%c0_28, %c0_29] : memref<8x64xf32, #tpu.memory_space<vmem>>, vector<8x64xf32>
      tpu.vector_store %arg10[%c0_28, %c0_29], %51 {strides = array<i32>} : memref<8x64xf32, #tpu.memory_space<vmem>>, vector<8x64xf32>,
    } else {
    }
    %c0 = arith.constant 0 : index
    %c0_1 = arith.constant 0 : index
    %3 = vector.load %arg10[%c0, %c0_1] : memref<8x64xf32, #tpu.memory_space<vmem>>, vector<8x64xf32>
    %4 = arith.truncf %3 : vector<8x64xf32> to vector<8x64xbf16>
    %c0_2 = arith.constant 0 : index
    %c0_3 = arith.constant 0 : index
    %5 = vector.load %arg7[%c0_2, %c0_3] : memref<64x128xbf16, #tpu.memory_space<vmem>>, vector<64x128xbf16>
    %cst = arith.constant dense<0.000000e+00> : vector<8x128xf32>
    %6 = tpu.matmul %4, %5, %cst {dimension_numbers = #tpu.dot_dimension_numbers<[1], [0], [0], [1], [0, 0, 1, 1], [], []>} : vector<8x64xbf16>, vector<64x128xbf16>, vector<8x128xf32> -> vector<8x128xf32>
    %c0_4 = arith.constant 0 : index
    %c0_5 = arith.constant 0 : index
    %7 = vector.load %arg8[%c0_4, %c0_5] : memref<1x128xf32, #tpu.memory_space<vmem>>, vector<1x128xf32>
    %8 = vector.broadcast %7 : vector<1x128xf32> to vector<8x128xf32>
    %9 = arith.addf %6, %8 : vector<8x128xf32>
    %c0_6 = arith.constant 0 : index
    %c0_7 = arith.constant 0 : index
    %10 = vector.load %arg9[%c0_6, %c0_7] : memref<8x128xf32, #tpu.memory_space<vmem>>, vector<8x128xf32>
    tpu.vector_store %arg9[%c0_6, %c0_7], %9 {strides = array<i32>} : memref<8x128xf32, #tpu.memory_space<vmem>>, vector<8x128xf32>,
    return
  }
  func.func @transform_0(%arg0: i32, %arg1: i32) -> (i32, i32) {
    %c0_i32 = arith.constant 0 : i32
    %c0_i32_0 = arith.constant 0 : i32
    return %arg0, %c0_i32 : i32, i32
  }
  func.func @transform_1(%arg0: i32, %arg1: i32) -> (i32, i32) {
    %c0_i32 = arith.constant 0 : i32
    %c0_i32_0 = arith.constant 0 : i32
    %c0_i32_1 = arith.constant 0 : i32
    return %c0_i32, %c0_i32_0 : i32, i32
  }
  func.func @transform_2(%arg0: i32, %arg1: i32) -> (i32, i32) {
    %c0_i32 = arith.constant 0 : i32
    %c0_i32_0 = arith.constant 0 : i32
    %c0_i32_1 = arith.constant 0 : i32
    return %c0_i32, %c0_i32_0 : i32, i32
  }
  func.func @transform_3(%arg0: i32, %arg1: i32) -> (i32, i32) {
    %c0_i32 = arith.constant 0 : i32
    %c0_i32_0 = arith.constant 0 : i32
    %c0_i32_1 = arith.constant 0 : i32
    return %c0_i32, %c0_i32_0 : i32, i32
  }
  func.func @transform_4(%arg0: i32, %arg1: i32) -> (i32, i32) {
    %c0_i32 = arith.constant 0 : i32
    %c0_i32_0 = arith.constant 0 : i32
    %c0_i32_1 = arith.constant 0 : i32
    return %c0_i32, %c0_i32_0 : i32, i32
  }
  func.func @transform_5(%arg0: i32, %arg1: i32) -> (i32, i32) {
    %c0_i32 = arith.constant 0 : i32
    %c0_i32_0 = arith.constant 0 : i32
    return %c0_i32, %arg1 : i32, i32
  }
  func.func @transform_6(%arg0: i32, %arg1: i32) -> (i32, i32) {
    %c0_i32 = arith.constant 0 : i32
    %c0_i32_0 = arith.constant 0 : i32
    return %c0_i32, %arg1 : i32, i32
  }
  func.func @transform_7(%arg0: i32, %arg1: i32) -> (i32, i32) {
    %c0_i32 = arith.constant 0 : i32
    return %arg0, %arg1 : i32, i32
  }
}

</mosaic_0001>

<llo_original>
// kernel: tpu_custom_call.1
$region0: #{tpu_custom_call.1}
  #allocation0 [shape = 'u32[]', space=smem, size = 0x4, offset = 0x4, fixed_abs, tag = 'smem constant byte address 0x4 - core index']
  #allocation1 [shape = 'u32[144,128]{1,0:T(1,128)}', space=vmem, size = 0x12000, scoped, tag = 'internal scratch']
  #allocation2 [shape = 'f32[8,64]{1,0:T(8,128)}', space=vmem, size = 0x1000, scoped, tag = 'scratch operand']
  %s0 = inlined_call_operand.hbm [shape: f32[8,32], index: 0, kind: input, shape index: {}]
  %s1 = inlined_call_operand.hbm [shape: bf16[32,64], index: 1, kind: input, shape index: {}]
  %s2 = inlined_call_operand.vmem [shape: f32[1,64], index: 2, kind: input, shape index: {}]
  %s3 = inlined_call_operand.vmem [shape: f32[1,64], index: 3, kind: input, shape index: {}]
  %s4 = inlined_call_operand.vmem [shape: f32[1,64], index: 4, kind: input, shape index: {}]
  %s5 = inlined_call_operand.hbm [shape: bf16[64,128], index: 5, kind: input, shape index: {}]
  %s6 = inlined_call_operand.vmem [shape: f32[1,128], index: 6, kind: input, shape index: {}]
  %s7 = inlined_call_operand.hbm [shape: f32[8,128], index: 7, kind: output, shape index: {}]
  %s8 = sld [smem:[#allocation0]]
  $region54: #{tpu_custom_call.1} parent=0
    _
  %s10 = ssub.s32 1, %s8
  %s11 = scalar_select 0, %s10, %s8
  $region1: #{tpu_custom_call.1} parent=0
    #allocation3 [shape = 'u8[4096]{0}', space=vmem, size = 0x1000, scoped, tag = 'input window, operand 0, single buffered']
    #allocation4 [shape = 's32[1]{0}', space=sflag, size = 0x4, scoped, tag = 'scoped memory for tpu_custom_call.1']
    #allocation5 [shape = 's32[1]{0}', space=sflag, size = 0x4, scoped, tag = 'scoped memory for tpu_custom_call.1']
    #allocation6 [shape = 'u8[8192]{0}', space=vmem, size = 0x2000, scoped, tag = 'input window, operand 1, single buffered']
    #allocation7 [shape = 's32[1]{0}', space=sflag, size = 0x4, scoped, tag = 'scoped memory for tpu_custom_call.1']
    #allocation8 [shape = 'u8[16384]{0}', space=vmem, size = 0x4000, scoped, tag = 'input window, operand 5, single buffered']
    #allocation9 [shape = 'u8[4096]{0}', space=vmem, size = 0x1000, scoped, tag = 'output window, operand 0, single buffered']
    %12 = vsyncpa [#allocation4], 0
    %13 = vsyncpa [#allocation7], 0
    %14 = vsyncpa [#allocation5], 0
    // Predicated region
    $region2: #{tpu_custom_call.1} parent=1 // pred_check
      _
    $region3: #{tpu_custom_call.1} parent=1 // pred_check_branch
      %16 = sbr.rel (0) target = $region5
    $region4: #{tpu_custom_call.1} parent=1 // pred_region
      %s18 = ssub.s32 128, 128
      %19 = vsyncadd [#allocation4], %s18
      %s21 = sshll.u32 [#allocation3], 4
      %s22 = int_to_ptr.vmem [resolvable:$true] %s21
      %24 = dma.hbm_to_vmem [thread:$0]  %s0, 128, %s22, [#allocation4]
    $region5: #{tpu_custom_call.1} parent=1 // pred_fallthru
      _
    // Predicated region
    $region6: #{tpu_custom_call.1} parent=1 // pred_check
      _
    $region7: #{tpu_custom_call.1} parent=1 // pred_check_branch
      %26 = sbr.rel (0) target = $region9
    $region8: #{tpu_custom_call.1} parent=1 // pred_region
      %s28 = ssub.s32 256, 256
      %29 = vsyncadd [#allocation7], %s28
      %s30 = sshll.u32 [#allocation6], 4
      %s31 = int_to_ptr.vmem [resolvable:$true] %s30
      %36 = dma.hbm_to_vmem [thread:$0]  %s1, 256, %s31, [#allocation7], 64, 64, 4
    $region9: #{tpu_custom_call.1} parent=1 // pred_fallthru
      _
    // Predicated region
    $region10: #{tpu_custom_call.1} parent=1 // pred_check
      _
    $region11: #{tpu_custom_call.1} parent=1 // pred_check_branch
      %38 = sbr.rel (0) target = $region13
    $region12: #{tpu_custom_call.1} parent=1 // pred_region
      _
    $region13: #{tpu_custom_call.1} parent=1 // pred_fallthru
      _
    // Predicated region
    $region14: #{tpu_custom_call.1} parent=1 // pred_check
      _
    $region15: #{tpu_custom_call.1} parent=1 // pred_check_branch
      %40 = sbr.rel (0) target = $region17
    $region16: #{tpu_custom_call.1} parent=1 // pred_region
      _
    $region17: #{tpu_custom_call.1} parent=1 // pred_fallthru
      _
    // Predicated region
    $region18: #{tpu_custom_call.1} parent=1 // pred_check
      _
    $region19: #{tpu_custom_call.1} parent=1 // pred_check_branch
      %42 = sbr.rel (0) target = $region21
    $region20: #{tpu_custom_call.1} parent=1 // pred_region
      _
    $region21: #{tpu_custom_call.1} parent=1 // pred_fallthru
      _
    // Predicated region
    $region22: #{tpu_custom_call.1} parent=1 // pred_check
      _
    $region23: #{tpu_custom_call.1} parent=1 // pred_check_branch
      %44 = sbr.rel (0) target = $region25
    $region24: #{tpu_custom_call.1} parent=1 // pred_region
      %s46 = ssub.s32 512, 512
      %47 = vsyncadd [#allocation7], %s46
      %s48 = sshll.u32 [#allocation8], 4
      %s49 = int_to_ptr.vmem [resolvable:$true] %s48
      %54 = dma.hbm_to_vmem [thread:$0]  %s5, 512, %s49, [#allocation7], 64, 64, 4
    $region25: #{tpu_custom_call.1} parent=1 // pred_fallthru
      _
    // Predicated region
    $region26: #{tpu_custom_call.1} parent=1 // pred_check
      _
    $region27: #{tpu_custom_call.1} parent=1 // pred_check_branch
      %56 = sbr.rel (0) target = $region29
    $region28: #{tpu_custom_call.1} parent=1 // pred_region
      _
    $region29: #{tpu_custom_call.1} parent=1 // pred_fallthru
      _
    // Predicated region
    $region30: #{tpu_custom_call.1} parent=1 // pred_check
      _
    $region31: #{tpu_custom_call.1} parent=1 // pred_check_branch
      %58 = sbr.rel (0) target = $region33
    $region32: #{tpu_custom_call.1} parent=1 // pred_region
      %59 = dma.done [#allocation4], 128
    $region33: #{tpu_custom_call.1} parent=1 // pred_fallthru
      _
    // Predicated region
    $region34: #{tpu_custom_call.1} parent=1 // pred_check
      _
    $region35: #{tpu_custom_call.1} parent=1 // pred_check_branch
      %61 = sbr.rel (0) target = $region37
    $region36: #{tpu_custom_call.1} parent=1 // pred_region
      %62 = dma.done [#allocation7], 256
    $region37: #{tpu_custom_call.1} parent=1 // pred_fallthru
      _
    // Predicated region
    $region38: #{tpu_custom_call.1} parent=1 // pred_check
      _
    $region39: #{tpu_custom_call.1} parent=1 // pred_check_branch
      %64 = sbr.rel (0) target = $region41
    $region40: #{tpu_custom_call.1} parent=1 // pred_region
      %65 = dma.done [#allocation7], 512
    $region41: #{tpu_custom_call.1} parent=1 // pred_fallthru
      _
    %p67 = scmp.eq.s32.totalorder 0, 0
    // Predicated region
    $region42: #{tpu_custom_call.1} parent=1 // pred_check
      %p68 = pneg %p67
    $region43: #{tpu_custom_call.1} parent=1 // pred_check_branch
      %70 = sbr.rel (%p68) target = $region45
    $region44: #{tpu_custom_call.1} parent=1 // pred_region
      %v71 = vld [vmem:[#allocation3] sm:$0xff]
      %v72 = vpack.c.bf16 %v71, %v71
      %v73 = vld [vmem:[#allocation6] sm:$0xf]
      %v74 = vld [vmem:[#allocation6 + $0x4] sm:$0xf]
      %v75 = vld [vmem:[#allocation6 + $0x8] sm:$0xf]
      %v76 = vld [vmem:[#allocation6 + $0xc] sm:$0xf]
      %v77 = vld [vmem:[%s2] sm:$0x1]
      %v79 = vlaneseq
      %v80 = vshrl.u32 %v79, 7
      %v81 = vsub.s32 0, %v80
      %v82 = vrot.slane %v77, %v81
      %v88 = vunpack.c.l.b16 %v73
      %v89 = vunpack.c.l.b16 %v74
      %v90 = vunpack.c.l.b16 %v75
      %v91 = vunpack.c.l.b16 %v76
      %v92 = vpack.c.b16 %v89, %v88
      %v93 = vpack.c.b16 %v91, %v90
      %vm96 = vcmask 261120
      %v98 = vsel %vm96, %v72, 0
      %100 = vmatprep.subr.bf16.mxu0 0
      %101 = vmatpush1.bf16.msra.mxu0 %v92
      %102 = vmatprep.subr.bf16.mxu0 0
      %103 = vmatpush1.bf16.msra.mxu0 %v93
      %104 = vmatprep.subr.bf16.mxu0 0
      %105 = vmatpush1.bf16.msra.mxu0 0
      %106 = vmatprep.subr.bf16.mxu0 0
      %107 = vmatpush1.bf16.msra.mxu0 0
      %108 = vmatprep.subr.bf16.mxu0 0
      %109 = vmatpush1.bf16.msra.mxu0 0
      %110 = vmatprep.subr.bf16.mxu0 0
      %111 = vmatpush1.bf16.msra.mxu0 0
      %112 = vmatprep.subr.bf16.mxu0 0
      %113 = vmatpush1.bf16.msra.mxu0 0
      %114 = vmatprep.subr.bf16.mxu0 0
      %115 = vmatpush1.bf16.msra.mxu0 0
      %116 = vmatprep.subr.bf16.mxu0 0
      %117 = vmatpush1.bf16.msra.mxu0 0
      %118 = vmatprep.subr.bf16.mxu0 0
      %119 = vmatpush1.bf16.msra.mxu0 0
      %120 = vmatprep.subr.bf16.mxu0 0
      %121 = vmatpush1.bf16.msra.mxu0 0
      %122 = vmatprep.subr.bf16.mxu0 0
      %123 = vmatpush1.bf16.msra.mxu0 0
      %124 = vmatprep.subr.bf16.mxu0 0
      %125 = vmatpush1.bf16.msra.mxu0 0
      %126 = vmatprep.subr.bf16.mxu0 0
      %127 = vmatpush1.bf16.msra.mxu0 0
      %128 = vmatprep.subr.bf16.mxu0 0
      %129 = vmatpush1.bf16.msra.mxu0 0
      %130 = vmatprep.subr.bf16.mxu0 0
      %131 = vmatpush1.bf16.msra.mxu0 0
      %132 = vmatprep.mubr.bf16.mxu0 0
      %133 = vmatmul.mubr.bf16.gmra.mrb[0].mxu0 %v98
      %v134 = vpop.f32.mrb[0].mxu0
      %v135 = vadd.f32 %v82, %v134
      %v136 = vpop.f32.mrb[0].mxu0
      %v137 = vpop.f32.mrb[0].mxu0
      %v138 = vpop.f32.mrb[0].mxu0
      %139 = vdwg.mxu0
      %v140 = vmul.f32 %v135, 0.5
      %v141 = vmul.f32 %v135, 0.70710677
      %v142 = verf.f32.pop %v141
      %v143 = vadd.f32 %v142, 1.0
      %v144 = vmul.f32 %v140, %v143
      %vm145 = vcmask 523264
      %v146 = vsel %vm145, %v144, 0.0
      %147 = vadd.xlane.f32.xlu0 %v146
      %v148 = vpop.xlane.xlu0 %147
      %v149 = vrcp.pop 64.0
      %v150 = vmul.f32 %v148, %v149
      %v151 = vmul.f32 %v144, %v144
      %v152 = vsel %vm145, %v151, 0.0
      %153 = vadd.xlane.f32.xlu0 %v152
      %v154 = vpop.xlane.xlu0 %153
      %v155 = vmul.f32 %v154, %v149
      %v156 = vmul.f32 %v150, %v150
      %v157 = vsub.f32 %v155, %v156
      %v158 = vmax.f32 %v157, 0.0
      %v159 = vsub.f32 %v144, %v150
      %v160 = vadd.f32 %v158, 1e-12
      %v161 = vrsqrt.pop %v160
      %v162 = vmul.f32 %v159, %v161
      %v163 = vld [vmem:[%s3] sm:$0x1]
      %v165 = vlaneseq
      %v166 = vshrl.u32 %v165, 7
      %v167 = vsub.s32 0, %v166
      %v168 = vrot.slane %v163, %v167
      %v170 = vmul.f32 %v162, %v168
      %v171 = vld [vmem:[%s4] sm:$0x1]
      %v173 = vlaneseq
      %v174 = vshrl.u32 %v173, 7
      %v175 = vsub.s32 0, %v174
      %v176 = vrot.slane %v171, %v175
      %v178 = vadd.f32 %v170, %v176
      %179 = vst.msk [vmem:[#allocation2] sm:$0xff] %vm145, %v178
    $region45: #{tpu_custom_call.1} parent=1 // pred_fallthru
      _
    %v180 = vld [vmem:[#allocation2] sm:$0xff]
    %v181 = vpack.c.bf16 %v180, %v180
    %v182 = vld [vmem:[#allocation8] sm:$0xf]
    %v183 = vld [vmem:[#allocation8 + $0x4] sm:$0xf]
    %v184 = vld [vmem:[#allocation8 + $0x8] sm:$0xf]
    %v185 = vld [vmem:[#allocation8 + $0xc] sm:$0xf]
    %v186 = vld [vmem:[#allocation8 + $0x10] sm:$0xf]
    %v187 = vld [vmem:[#allocation8 + $0x14] sm:$0xf]
    %v188 = vld [vmem:[#allocation8 + $0x18] sm:$0xf]
    %v189 = vld [vmem:[#allocation8 + $0x1c] sm:$0xf]
    %v190 = vld [vmem:[%s6] sm:$0x1]
    %v192 = vlaneseq
    %v193 = vshrl.u32 %v192, 7
    %v194 = vsub.s32 0, %v193
    %v195 = vrot.slane %v190, %v194
    %v205 = vunpack.c.l.b16 %v182
    %v206 = vunpack.c.l.b16 %v183
    %v207 = vunpack.c.l.b16 %v184
    %v208 = vunpack.c.l.b16 %v185
    %v209 = vunpack.c.l.b16 %v186
    %v210 = vunpack.c.l.b16 %v187
    %v211 = vunpack.c.l.b16 %v188
    %v212 = vunpack.c.l.b16 %v189
    %v213 = vpack.c.b16 %v206, %v205
    %v214 = vpack.c.b16 %v208, %v207
    %v215 = vpack.c.b16 %v210, %v209
    %v216 = vpack.c.b16 %v212, %v211
    %vm221 = vcmask 523264
    %v223 = vsel %vm221, %v181, 0
    %225 = vmatprep.subr.bf16.mxu0 0
    %226 = vmatpush1.bf16.msra.mxu0 %v213
    %227 = vmatprep.subr.bf16.mxu0 0
    %228 = vmatpush1.bf16.msra.mxu0 %v214
    %229 = vmatprep.subr.bf16.mxu0 0
    %230 = vmatpush1.bf16.msra.mxu0 %v215
    %231 = vmatprep.subr.bf16.mxu0 0
    %232 = vmatpush1.bf16.msra.mxu0 %v216
    %233 = vmatprep.subr.bf16.mxu0 0
    %234 = vmatpush1.bf16.msra.mxu0 0
    %235 = vmatprep.subr.bf16.mxu0 0
    %236 = vmatpush1.bf16.msra.mxu0 0
    %237 = vmatprep.subr.bf16.mxu0 0
    %238 = vmatpush1.bf16.msra.mxu0 0
    %239 = vmatprep.subr.bf16.mxu0 0
    %240 = vmatpush1.bf16.msra.mxu0 0
    %241 = vmatprep.subr.bf16.mxu0 0
    %242 = vmatpush1.bf16.msra.mxu0 0
    %243 = vmatprep.subr.bf16.mxu0 0
    %244 = vmatpush1.bf16.msra.mxu0 0
    %245 = vmatprep.subr.bf16.mxu0 0
    %246 = vmatpush1.bf16.msra.mxu0 0
    %247 = vmatprep.subr.bf16.mxu0 0
    %248 = vmatpush1.bf16.msra.mxu0 0
    %249 = vmatprep.subr.bf16.mxu0 0
    %250 = vmatpush1.bf16.msra.mxu0 0
    %251 = vmatprep.subr.bf16.mxu0 0
    %252 = vmatpush1.bf16.msra.mxu0 0
    %253 = vmatprep.subr.bf16.mxu0 0
    %254 = vmatpush1.bf16.msra.mxu0 0
    %255 = vmatprep.subr.bf16.mxu0 0
    %256 = vmatpush1.bf16.msra.mxu0 0
    %257 = vmatprep.mubr.bf16.mxu0 0
    %258 = vmatmul.mubr.bf16.gmra.mrb[0].mxu0 %v223
    %v259 = vpop.f32.mrb[0].mxu0
    %v260 = vadd.f32 %v195, %v259
    %v261 = vpop.f32.mrb[0].mxu0
    %v262 = vpop.f32.mrb[0].mxu0
    %v263 = vpop.f32.mrb[0].mxu0
    %264 = vdwg.mxu0
    %265 = vst [vmem:[#allocation9] sm:$0xff] %v260
    // Predicated region
    $region46: #{tpu_custom_call.1} parent=1 // pred_check
      _
    $region47: #{tpu_custom_call.1} parent=1 // pred_check_branch
      %267 = sbr.rel (0) target = $region49
    $region48: #{tpu_custom_call.1} parent=1 // pred_region
      %s269 = ssub.s32 128, 128
      %270 = vsyncadd [#allocation5], %s269
      %s272 = sshll.u32 [#allocation9], 4
      %s273 = int_to_ptr.vmem [resolvable:$true] %s272
      %275 = dma.vmem_to_hbm [thread:$0]  %s273, 128, %s7, [#allocation5]
    $region49: #{tpu_custom_call.1} parent=1 // pred_fallthru
      _
    // Predicated region
    $region50: #{tpu_custom_call.1} parent=1 // pred_check
      _
    $region51: #{tpu_custom_call.1} parent=1 // pred_check_branch
      %277 = sbr.rel (0) target = $region53
    $region52: #{tpu_custom_call.1} parent=1 // pred_region
      %278 = dma.done [#allocation5], 128
    $region53: #{tpu_custom_call.1} parent=1 // pred_fallthru
      _
    %279 = vsyncpa [#allocation4], 1
    %280 = vsyncpa [#allocation7], 1
    %281 = vsyncpa [#allocation5], 1

</llo_original>
